<compile_context>
chip_gen: v5e
topology: v5e:2x2
jax: 0.10.0
libtpu: 0.0.40
codegen_flags: <defaults>
</compile_context>

<pallas_src>
import functools

import jax
import jax.numpy as jnp
from jax.experimental import pallas as pl
from jax.experimental.pallas import tpu as pltpu

LANE = 128                       # vreg lane width (last dim)
SUBLANE = 8                      # vreg sublane count (second-to-last dim)
MAX_BATCH_TILE = 2048            # cap so tiles also fit v7x's 64 MiB VMEM comfortably
MIN_BATCH_TILE = 256
GRIDLESS_MAX_B = 256             # at/below this, run a single gridless fused block
VMEM_TILE_BUDGET = 12 * 1024 * 1024  # conservative: under every gen's scoped default


def _round_up(n, m):
    return ((n + m - 1) // m) * m


# ----------------------------------------------------------------------------
# Fused MLP kernel: the whole forward pass in one kernel body.
# ----------------------------------------------------------------------------
def _fused_mlp_kernel(*refs, n_layers):
    # refs = (x_ref, w0, b0, w1, b1, ..., w{L-1}, b{L-1}, o_ref), all in VMEM.
    # Hidden feature dims are zero-padded to multiples of 128; padded hidden
    # columns stay exactly 0 through Linear+ReLU and never contaminate results.
    x_ref, o_ref = refs[0], refs[-1]
    wb = refs[1:-1]

    h = x_ref[...]
    for i in range(n_layers):
        w = wb[2 * i][...]
        b = wb[2 * i + 1][...]            # (1, N) -> broadcast over rows on the vreg
        # If weights were pre-cast to bf16 (v6e/v7x MXU fast path), cast only the
        # streaming activations; accumulate in f32 on the MXU either way.
        lhs = h.astype(w.dtype) if h.dtype != w.dtype else h
        h = jnp.dot(lhs, w, preferred_element_type=jnp.float32) + b
        if i < n_layers - 1:
            # TODO(synk): training-mode GaussianNoise after layer 0 omitted;
            # eval-mode forward (self.training == False or std == 0) is identity.
            h = jnp.maximum(h, 0.0)       # ReLU, kept in f32 (v5e has no bf16 VPU)
        else:
            h = jax.nn.sigmoid(h)         # final activation (EUP exp + reciprocal)
    o_ref[...] = h.astype(o_ref.dtype)


# ----------------------------------------------------------------------------
# One-time parameter preparation (pad hidden dims, optional bf16 pre-cast).
# ----------------------------------------------------------------------------
def prepare_params(params, matmul_dtype=None):
    """Pad hidden feature dims to multiples of 128 (exactness preserved by zero
    columns + ReLU) and optionally pre-cast weights for the MXU.  Call ONCE and
    reuse the result across forward calls (removes per-call pad/cast XLA ops)."""
    n = len(params)
    prepared = []
    for i, (w, b) in enumerate(params):
        k, m = w.shape
        kp = k if i == 0 else _round_up(k, LANE)        # first-layer K stays true width
        mp = m if i == n - 1 else _round_up(m, LANE)    # last-layer N stays true width
        w = jnp.pad(w, ((0, kp - k), (0, mp - m)))
        b = jnp.pad(b, ((0, 0), (0, mp - m)))
        if matmul_dtype is not None:
            w = w.astype(matmul_dtype)                  # resident weights pre-cast once
        prepared.append((w, b.astype(jnp.float32)))     # bias added post-accum in f32
    return tuple(prepared)


# ----------------------------------------------------------------------------
# Batch-tile derivation (VMEM budget, v7x 2-TC friendliness).
# ----------------------------------------------------------------------------
def _pick_batch_tile(B, widths):
    # f32 bytes per row: 2x double-buffered x block, 2x double-buffered out block,
    # plus ~2 copies of the widest intermediate activation (compiler scratch).
    bytes_per_row = 4 * (2 * widths[0] + 2 * widths[-1] + 2 * max(widths))
    tb = VMEM_TILE_BUDGET // max(bytes_per_row, 1)
    tb = max(MIN_BATCH_TILE, min(MAX_BATCH_TILE, tb))
    # Ensure >= 2 grid steps so the "parallel" axis shards across both TCs on v7x.
    tb = min(tb, _round_up(pl.cdiv(B, 2), SUBLANE))
    tb = max(SUBLANE, (tb // SUBLANE) * SUBLANE)
    return tb


# ----------------------------------------------------------------------------
# Forward: single fused pallas_call, no wrapper-side pads or slices.
# ----------------------------------------------------------------------------
def _emulator_forward_impl(x, prepared_params):
    B, K0 = x.shape
    n_layers = len(prepared_params)
    N_out = prepared_params[-1][0].shape[1]
    dtype = x.dtype

    kernel = functools.partial(_fused_mlp_kernel, n_layers=n_layers)
    wb_args = []
    for w, b in prepared_params:
        wb_args += [w, b]

    if B <= GRIDLESS_MAX_B:
        # Gridless: everything (x, all weights/biases, output) is one VMEM block.
        return pl.pallas_call(
            kernel,
            out_shape=jax.ShapeDtypeStruct((B, N_out), dtype),
            in_specs=[pl.BlockSpec(memory_space=pltpu.MemorySpace.VMEM)]
            * (1 + 2 * n_layers),
            out_specs=pl.BlockSpec(memory_space=pltpu.MemorySpace.VMEM),
        )(x, *wb_args)

    # Batch-tiled grid; weights stay resident (same block every iteration).
    widths = [K0] + [w.shape[1] for w, _ in prepared_params]
    tb = _pick_batch_tile(B, widths)
    grid_b = pl.cdiv(B, tb)          # last tile may be partial: OOB stores are masked,
                                     # garbage rows are row-independent and discarded.
    in_specs = [pl.BlockSpec((tb, K0), lambda i: (i, 0))]   # full-extent K (no x pad)
    for w, b in prepared_params:
        in_specs.append(pl.BlockSpec(w.shape, lambda i: (0, 0)))
        in_specs.append(pl.BlockSpec(b.shape, lambda i: (0, 0)))

    return pl.pallas_call(
        kernel,
        out_shape=jax.ShapeDtypeStruct((B, N_out), dtype),
        grid=(grid_b,),
        in_specs=in_specs,
        out_specs=pl.BlockSpec((tb, N_out), lambda i: (i, 0)),
        compiler_params=pltpu.CompilerParams(
            dimension_semantics=("parallel",),      # shard batch across TCs (v7x)
            vmem_limit_bytes=32 * 1024 * 1024,      # explicit (v5e default is 16 MiB)
        ),
    )(x, *wb_args)


emulator_forward = jax.jit(_emulator_forward_impl)


# ----------------------------------------------------------------------------
# Parameter init (PyTorch nn.Linear default: U[-1/sqrt(in), 1/sqrt(in)])
# ----------------------------------------------------------------------------
def init_emulator_params(key, layer_sizes):
    params = []
    for i in range(len(layer_sizes) - 1):
        fan_in, fan_out = layer_sizes[i], layer_sizes[i + 1]
        key, kw, kb = jax.random.split(key, 3)
        bound = 1.0 / jnp.sqrt(jnp.float32(fan_in))
        w = jax.random.uniform(kw, (fan_in, fan_out), jnp.float32, -bound, bound)
        b = jax.random.uniform(kb, (1, fan_out), jnp.float32, -bound, bound)
        params.append((w, b))
    return params


def reference_forward(x, params):
    h = x
    for i, (w, b) in enumerate(params):
        h = h @ w + b
        h = jnp.maximum(h, 0.0) if i < len(params) - 1 else jax.nn.sigmoid(h)
    return h


# ----------------------------------------------------------------------------
# Demo / self-test
# ----------------------------------------------------------------------------
if __name__ == "__main__":
    key = jax.random.PRNGKey(0)
    layer_sizes = [32, 64, 64, 16]   # small MLP consistent with Emulator(layer_sizes)
    batch = 8

    key, kx, kp, kx2 = jax.random.split(key, 4)
    x = jax.random.normal(kx, (batch, layer_sizes[0]), jnp.float32)
    params = init_emulator_params(kp, layer_sizes)

    # One-time preparation (pad hidden dims; f32 MXU operands by default).
    prep_f32 = prepare_params(params)

    # Small batch -> gridless fused kernel (no batch pad, no output slice).
    out = jax.block_until_ready(emulator_forward(x, prep_f32))
    assert out.shape == (batch, layer_sizes[-1])
    assert bool(jnp.all(out >= 0.0)) and bool(jnp.all(out <= 1.0))
    ref = reference_forward(x, params)
    assert jnp.allclose(out, ref, atol=1e-5, rtol=1e-5)

    # Larger batch -> batch-tiled "parallel" grid path with a partial last tile
    # (exercises masked OOB output stores; no row pad / slice anywhere).
    xb = jax.random.normal(kx2, (600, layer_sizes[0]), jnp.float32)
    outb = jax.block_until_ready(emulator_forward(xb, prep_f32))
    refb = reference_forward(xb, params)
    assert outb.shape == (600, layer_sizes[-1])
    assert jnp.allclose(outb, refb, atol=1e-5, rtol=1e-5)
    assert bool(jnp.all(jnp.isfinite(outb)))   # partial-tile garbage never leaks

    # bf16 MXU-operand path (v6e/v7x throughput): weights pre-cast ONCE, f32 accumulate.
    prep_bf16 = prepare_params(params, matmul_dtype=jnp.bfloat16)
    out_bf = jax.block_until_ready(emulator_forward(xb, prep_bf16))
    assert jnp.allclose(out_bf, refb, atol=5e-2)

    print("KERNEL_OK")
</pallas_src>

<mosaic_0001>
module attributes {stable_mosaic.version = 11 : i64} {
  func.func @_fused_mlp_kernel(%arg0: memref<8x32xf32, #tpu.memory_space<vmem>>, %arg1: memref<32x128xf32, #tpu.memory_space<vmem>>, %arg2: memref<1x128xf32, #tpu.memory_space<vmem>>, %arg3: memref<128x128xf32, #tpu.memory_space<vmem>>, %arg4: memref<1x128xf32, #tpu.memory_space<vmem>>, %arg5: memref<128x16xf32, #tpu.memory_space<vmem>>, %arg6: memref<1x16xf32, #tpu.memory_space<vmem>>, %arg7: memref<8x16xf32, #tpu.memory_space<vmem>>) attributes {dimension_semantics = [], scalar_prefetch = 0 : i64, scratch_operands = 0 : i64, tpu.core_type = #tpu.core_type<tc>} {
    %c0 = arith.constant 0 : index
    %c0_0 = arith.constant 0 : index
    %0 = vector.load %arg0[%c0, %c0_0] : memref<8x32xf32, #tpu.memory_space<vmem>>, vector<8x32xf32>
    %c0_1 = arith.constant 0 : index
    %c0_2 = arith.constant 0 : index
    %1 = vector.load %arg1[%c0_1, %c0_2] : memref<32x128xf32, #tpu.memory_space<vmem>>, vector<32x128xf32>
    %c0_3 = arith.constant 0 : index
    %c0_4 = arith.constant 0 : index
    %2 = vector.load %arg2[%c0_3, %c0_4] : memref<1x128xf32, #tpu.memory_space<vmem>>, vector<1x128xf32>
    %cst = arith.constant dense<0.000000e+00> : vector<8x128xf32>
    %3 = tpu.matmul %0, %1, %cst {dimension_numbers = #tpu.dot_dimension_numbers<[1], [0], [0], [1], [0, 0, 1, 1], [], []>} : vector<8x32xf32>, vector<32x128xf32>, vector<8x128xf32> -> vector<8x128xf32>
    %4 = vector.broadcast %2 : vector<1x128xf32> to vector<8x128xf32>
    %5 = arith.addf %3, %4 : vector<8x128xf32>
    %cst_5 = arith.constant 0.000000e+00 : f32
    %6 = vector.broadcast %cst_5 : f32 to vector<8x128xf32>
    %7 = arith.maximumf %5, %6 : vector<8x128xf32>
    %c0_6 = arith.constant 0 : index
    %c0_7 = arith.constant 0 : index
    %8 = vector.load %arg3[%c0_6, %c0_7] : memref<128x128xf32, #tpu.memory_space<vmem>>, vector<128x128xf32>
    %c0_8 = arith.constant 0 : index
    %c0_9 = arith.constant 0 : index
    %9 = vector.load %arg4[%c0_8, %c0_9] : memref<1x128xf32, #tpu.memory_space<vmem>>, vector<1x128xf32>
    %cst_10 = arith.constant dense<0.000000e+00> : vector<8x128xf32>
    %10 = tpu.matmul %7, %8, %cst_10 {dimension_numbers = #tpu.dot_dimension_numbers<[1], [0], [0], [1], [0, 0, 1, 1], [], []>} : vector<8x128xf32>, vector<128x128xf32>, vector<8x128xf32> -> vector<8x128xf32>
    %11 = vector.broadcast %9 : vector<1x128xf32> to vector<8x128xf32>
    %12 = arith.addf %10, %11 : vector<8x128xf32>
    %cst_11 = arith.constant 0.000000e+00 : f32
    %13 = vector.broadcast %cst_11 : f32 to vector<8x128xf32>
    %14 = arith.maximumf %12, %13 : vector<8x128xf32>
    %c0_12 = arith.constant 0 : index
    %c0_13 = arith.constant 0 : index
    %15 = vector.load %arg5[%c0_12, %c0_13] : memref<128x16xf32, #tpu.memory_space<vmem>>, vector<128x16xf32>
    %c0_14 = arith.constant 0 : index
    %c0_15 = arith.constant 0 : index
    %16 = vector.load %arg6[%c0_14, %c0_15] : memref<1x16xf32, #tpu.memory_space<vmem>>, vector<1x16xf32>
    %cst_16 = arith.constant dense<0.000000e+00> : vector<8x16xf32>
    %17 = tpu.matmul %14, %15, %cst_16 {dimension_numbers = #tpu.dot_dimension_numbers<[1], [0], [0], [1], [0, 0, 1, 1], [], []>} : vector<8x128xf32>, vector<128x16xf32>, vector<8x16xf32> -> vector<8x16xf32>
    %18 = vector.broadcast %16 : vector<1x16xf32> to vector<8x16xf32>
    %19 = arith.addf %17, %18 : vector<8x16xf32>
    %20 = arith.negf %19 : vector<8x16xf32>
    %21 = math.exp %20 : vector<8x16xf32>
    %cst_17 = arith.constant 1.000000e+00 : f32
    %22 = vector.broadcast %cst_17 : f32 to vector<8x16xf32>
    %23 = arith.addf %22, %21 : vector<8x16xf32>
    %24 = arith.divf %22, %23 : vector<8x16xf32>
    %c0_18 = arith.constant 0 : index
    %c0_19 = arith.constant 0 : index
    %25 = vector.load %arg7[%c0_18, %c0_19] : memref<8x16xf32, #tpu.memory_space<vmem>>, vector<8x16xf32>
    tpu.vector_store %arg7[%c0_18, %c0_19], %24 {strides = array<i32>} : memref<8x16xf32, #tpu.memory_space<vmem>>, vector<8x16xf32>,
    return
  }
}

</mosaic_0001>

<llo_original>
// kernel: _emulator_forward_impl.1
$region0: #{_emulator_forward_impl.1}
  #allocation0 [shape = 'u32[]', space=smem, size = 0x4, offset = 0x4, fixed_abs, tag = 'smem constant byte address 0x4 - core index']
  #allocation1 [shape = 'u32[72,128]{1,0:T(1,128)}', space=vmem, size = 0x9000, scoped, tag = 'internal scratch']
  %s0 = inlined_call_operand.vmem [shape: f32[8,32], index: 0, kind: input, shape index: {}]
  %s1 = inlined_call_operand.hbm [shape: f32[32,128], index: 1, kind: input, shape index: {}]
  %s2 = inlined_call_operand.vmem [shape: f32[1,128], index: 2, kind: input, shape index: {}]
  %s3 = inlined_call_operand.vmem [shape: f32[128,128], index: 3, kind: input, shape index: {}]
  %s4 = inlined_call_operand.vmem [shape: f32[1,128], index: 4, kind: input, shape index: {}]
  %s5 = inlined_call_operand.vmem [shape: f32[128,16], index: 5, kind: input, shape index: {}]
  %s6 = inlined_call_operand.vmem [shape: f32[1,16], index: 6, kind: input, shape index: {}]
  %s7 = inlined_call_operand.hbm [shape: f32[8,16], index: 7, kind: output, shape index: {}]
  %s8 = sld [smem:[#allocation0]]
  $region42: #{_emulator_forward_impl.1} parent=0
    _
  %s10 = ssub.s32 1, %s8
  %s11 = scalar_select 0, %s10, %s8
  $region1: #{_emulator_forward_impl.1} parent=0
    #allocation2 [shape = 'u8[16384]{0}', space=vmem, size = 0x4000, scoped, tag = 'input window, operand 1, single buffered']
    #allocation3 [shape = 's32[1]{0}', space=sflag, size = 0x4, scoped, tag = 'scoped memory for _emulator_forward_impl.1']
    #allocation4 [shape = 's32[1]{0}', space=sflag, size = 0x4, scoped, tag = 'scoped memory for _emulator_forward_impl.1']
    #allocation5 [shape = 'u8[4096]{0}', space=vmem, size = 0x1000, scoped, tag = 'output window, operand 0, single buffered']
    %12 = vsyncpa [#allocation3], 0
    %13 = vsyncpa [#allocation4], 0
    // Predicated region
    $region2: #{_emulator_forward_impl.1} parent=1 // pred_check
      _
    $region3: #{_emulator_forward_impl.1} parent=1 // pred_check_branch
      %15 = sbr.rel (0) target = $region5
    $region4: #{_emulator_forward_impl.1} parent=1 // pred_region
      _
    $region5: #{_emulator_forward_impl.1} parent=1 // pred_fallthru
      _
    // Predicated region
    $region6: #{_emulator_forward_impl.1} parent=1 // pred_check
      _
    $region7: #{_emulator_forward_impl.1} parent=1 // pred_check_branch
      %17 = sbr.rel (0) target = $region9
    $region8: #{_emulator_forward_impl.1} parent=1 // pred_region
      %19 = vsyncadd [#allocation3], 0
      %s20 = sshll.u32 %s1, 4
      %s21 = int_to_ptr.hbm [resolvable:$true] %s20
      %s22 = sshll.u32 [#allocation2], 4
      %s23 = int_to_ptr.vmem [resolvable:$true] %s22
      %28 = dma.hbm_to_vmem [thread:$0]  %s21, 512, %s23, [#allocation3], 128, 128, 8
    $region9: #{_emulator_forward_impl.1} parent=1 // pred_fallthru
      _
    // Predicated region
    $region10: #{_emulator_forward_impl.1} parent=1 // pred_check
      _
    $region11: #{_emulator_forward_impl.1} parent=1 // pred_check_branch
      %30 = sbr.rel (0) target = $region13
    $region12: #{_emulator_forward_impl.1} parent=1 // pred_region
      _
    $region13: #{_emulator_forward_impl.1} parent=1 // pred_fallthru
      _
    // Predicated region
    $region14: #{_emulator_forward_impl.1} parent=1 // pred_check
      _
    $region15: #{_emulator_forward_impl.1} parent=1 // pred_check_branch
      %32 = sbr.rel (0) target = $region17
    $region16: #{_emulator_forward_impl.1} parent=1 // pred_region
      _
    $region17: #{_emulator_forward_impl.1} parent=1 // pred_fallthru
      _
    // Predicated region
    $region18: #{_emulator_forward_impl.1} parent=1 // pred_check
      _
    $region19: #{_emulator_forward_impl.1} parent=1 // pred_check_branch
      %34 = sbr.rel (0) target = $region21
    $region20: #{_emulator_forward_impl.1} parent=1 // pred_region
      _
    $region21: #{_emulator_forward_impl.1} parent=1 // pred_fallthru
      _
    // Predicated region
    $region22: #{_emulator_forward_impl.1} parent=1 // pred_check
      _
    $region23: #{_emulator_forward_impl.1} parent=1 // pred_check_branch
      %36 = sbr.rel (0) target = $region25
    $region24: #{_emulator_forward_impl.1} parent=1 // pred_region
      _
    $region25: #{_emulator_forward_impl.1} parent=1 // pred_fallthru
      _
    // Predicated region
    $region26: #{_emulator_forward_impl.1} parent=1 // pred_check
      _
    $region27: #{_emulator_forward_impl.1} parent=1 // pred_check_branch
      %38 = sbr.rel (0) target = $region29
    $region28: #{_emulator_forward_impl.1} parent=1 // pred_region
      _
    $region29: #{_emulator_forward_impl.1} parent=1 // pred_fallthru
      _
    // Predicated region
    $region30: #{_emulator_forward_impl.1} parent=1 // pred_check
      _
    $region31: #{_emulator_forward_impl.1} parent=1 // pred_check_branch
      %40 = sbr.rel (0) target = $region33
    $region32: #{_emulator_forward_impl.1} parent=1 // pred_region
      %42 = dma.done [#allocation3], 512
    $region33: #{_emulator_forward_impl.1} parent=1 // pred_fallthru
      _
    %v43 = vld [vmem:[%s0] sm:$0xff]
    %v44 = vld [vmem:[#allocation2] sm:$0xff]
    %v45 = vld [vmem:[#allocation2 + $0x8] sm:$0xff]
    %v46 = vld [vmem:[#allocation2 + $0x10] sm:$0xff]
    %v47 = vld [vmem:[#allocation2 + $0x18] sm:$0xff]
    %v48 = vld [vmem:[%s2] sm:$0x1]
    %v50 = vperm.slane %v48, 0
    %vm52 = vcmask 261120
    %v54 = vsel %vm52, %v43, 0
    %56 = vmatpush.msra.mxu0 0.0
    %57 = vmatpush.msra.mxu0 0.0
    %58 = vmatpush.msra.mxu0 0.0
    %59 = vmatpush.msra.mxu0 0.0
    %60 = vmatpush.msra.mxu0 0.0
    %61 = vmatpush.msra.mxu0 0.0
    %62 = vmatpush.msra.mxu0 0.0
    %63 = vmatpush.msra.mxu0 0.0
    %64 = vmatpush.msra.mxu0 0.0
    %65 = vmatpush.msra.mxu0 0.0
    %66 = vmatpush.msra.mxu0 0.0
    %67 = vmatpush.msra.mxu0 0.0
    %68 = vmatpush.msra.mxu0 %v47
    %69 = vmatpush.msra.mxu0 %v46
    %70 = vmatpush.msra.mxu0 %v45
    %71 = vmatpush.msra.mxu0 %v44
    %72 = vmatmul.f32.gmra.mxu0 %v54
    %v73 = vpop.f32.mrf.mxu0
    %v74 = vadd.f32 %v50, %v73
    %75 = vdwg.mxu0
    %v76 = vmax.f32 %v74, 0.0
    %v77 = vld [vmem:[%s3] sm:$0xff]
    %v78 = vld [vmem:[%s3 + $0x8] sm:$0xff]
    %v79 = vld [vmem:[%s3 + $0x10] sm:$0xff]
    %v80 = vld [vmem:[%s3 + $0x18] sm:$0xff]
    %v81 = vld [vmem:[%s3 + $0x20] sm:$0xff]
    %v82 = vld [vmem:[%s3 + $0x28] sm:$0xff]
    %v83 = vld [vmem:[%s3 + $0x30] sm:$0xff]
    %v84 = vld [vmem:[%s3 + $0x38] sm:$0xff]
    %v85 = vld [vmem:[%s3 + $0x40] sm:$0xff]
    %v86 = vld [vmem:[%s3 + $0x48] sm:$0xff]
    %v87 = vld [vmem:[%s3 + $0x50] sm:$0xff]
    %v88 = vld [vmem:[%s3 + $0x58] sm:$0xff]
    %v89 = vld [vmem:[%s3 + $0x60] sm:$0xff]
    %v90 = vld [vmem:[%s3 + $0x68] sm:$0xff]
    %v91 = vld [vmem:[%s3 + $0x70] sm:$0xff]
    %v92 = vld [vmem:[%s3 + $0x78] sm:$0xff]
    %v93 = vld [vmem:[%s4] sm:$0x1]
    %v95 = vperm.slane %v93, 0
    %97 = vmatpush.msra.mxu0 %v92
    %98 = vmatpush.msra.mxu0 %v91
    %99 = vmatpush.msra.mxu0 %v90
    %100 = vmatpush.msra.mxu0 %v89
    %101 = vmatpush.msra.mxu0 %v88
    %102 = vmatpush.msra.mxu0 %v87
    %103 = vmatpush.msra.mxu0 %v86
    %104 = vmatpush.msra.mxu0 %v85
    %105 = vmatpush.msra.mxu0 %v84
    %106 = vmatpush.msra.mxu0 %v83
    %107 = vmatpush.msra.mxu0 %v82
    %108 = vmatpush.msra.mxu0 %v81
    %109 = vmatpush.msra.mxu0 %v80
    %110 = vmatpush.msra.mxu0 %v79
    %111 = vmatpush.msra.mxu0 %v78
    %112 = vmatpush.msra.mxu0 %v77
    %113 = vmatmul.f32.gmra.mxu0 %v76
    %v114 = vpop.f32.mrf.mxu0
    %v115 = vadd.f32 %v95, %v114
    %116 = vdwg.mxu0
    %v117 = vmax.f32 %v115, 0.0
    %v118 = vld [vmem:[%s5] sm:$0xff]
    %v119 = vld [vmem:[%s5 + $0x8] sm:$0xff]
    %v120 = vld [vmem:[%s5 + $0x10] sm:$0xff]
    %v121 = vld [vmem:[%s5 + $0x18] sm:$0xff]
    %v122 = vld [vmem:[%s5 + $0x20] sm:$0xff]
    %v123 = vld [vmem:[%s5 + $0x28] sm:$0xff]
    %v124 = vld [vmem:[%s5 + $0x30] sm:$0xff]
    %v125 = vld [vmem:[%s5 + $0x38] sm:$0xff]
    %v126 = vld [vmem:[%s5 + $0x40] sm:$0xff]
    %v127 = vld [vmem:[%s5 + $0x48] sm:$0xff]
    %v128 = vld [vmem:[%s5 + $0x50] sm:$0xff]
    %v129 = vld [vmem:[%s5 + $0x58] sm:$0xff]
    %v130 = vld [vmem:[%s5 + $0x60] sm:$0xff]
    %v131 = vld [vmem:[%s5 + $0x68] sm:$0xff]
    %v132 = vld [vmem:[%s5 + $0x70] sm:$0xff]
    %v133 = vld [vmem:[%s5 + $0x78] sm:$0xff]
    %v134 = vld [vmem:[%s6] sm:$0x1]
    %v136 = vperm.slane %v134, 0
    %138 = vmatpush.msra.mxu0 %v133
    %139 = vmatpush.msra.mxu0 %v132
    %140 = vmatpush.msra.mxu0 %v131
    %141 = vmatpush.msra.mxu0 %v130
    %142 = vmatpush.msra.mxu0 %v129
    %143 = vmatpush.msra.mxu0 %v128
    %144 = vmatpush.msra.mxu0 %v127
    %145 = vmatpush.msra.mxu0 %v126
    %146 = vmatpush.msra.mxu0 %v125
    %147 = vmatpush.msra.mxu0 %v124
    %148 = vmatpush.msra.mxu0 %v123
    %149 = vmatpush.msra.mxu0 %v122
    %150 = vmatpush.msra.mxu0 %v121
    %151 = vmatpush.msra.mxu0 %v120
    %152 = vmatpush.msra.mxu0 %v119
    %153 = vmatpush.msra.mxu0 %v118
    %154 = vmatmul.f32.gmra.mxu0 %v117
    %v155 = vpop.f32.mrf.mxu0
    %v156 = vadd.f32 %v136, %v155
    %157 = vdwg.mxu0
    %v158 = vxor.u32 %v156, 2147483648
    %v159 = vmul.f32 %v158, 1.442695
    %v160 = vpow.pop %v159
    %v161 = vadd.f32 %v160, 1.0
    %v162 = vrcp.pop %v161
    %v163 = vmul.f32 %v161, %v162
    %v164 = vsub.f32 1.0, %v163
    %v165 = vmul.f32 %v162, %v164
    %v166 = vadd.f32 %v162, %v165
    %vm167 = vweird.f32 %v161
    %vm168 = vweird.f32 %v162
    %vm169 = vmor %vm167, %vm168
    %v170 = vsel %vm169, %v162, %v166
    %v171 = vand.u32 2147483647, %v161
    %vm172 = vcmp.eq.f32.partialorder %v171, 8.507059e+37
    %v173 = vand.u32 %v161, 2147483648
    %v174 = vor.u32 1.1754944e-38, %v173
    %v175 = vsel %vm172, %v174, %v170
    %v176 = vmul.f32 1.0, %v175
    %vm177 = vcmask 130048
    %178 = vst.msk [vmem:[#allocation5] sm:$0xff] %vm177, %v176
    // Predicated region
    $region34: #{_emulator_forward_impl.1} parent=1 // pred_check
      _
    $region35: #{_emulator_forward_impl.1} parent=1 // pred_check_branch
      %180 = sbr.rel (0) target = $region37
    $region36: #{_emulator_forward_impl.1} parent=1 // pred_region
      %182 = vsyncadd [#allocation4], 0
      %s184 = sshll.u32 [#allocation5], 4
      %s185 = int_to_ptr.vmem [resolvable:$true] %s184
      %s186 = sshll.u32 %s7, 4
      %s187 = int_to_ptr.hbm [resolvable:$true] %s186
      %189 = dma.vmem_to_hbm [thread:$0]  %s185, 128, %s187, [#allocation4]
    $region37: #{_emulator_forward_impl.1} parent=1 // pred_fallthru
      _
    // Predicated region
    $region38: #{_emulator_forward_impl.1} parent=1 // pred_check
      _
    $region39: #{_emulator_forward_impl.1} parent=1 // pred_check_branch
      %191 = sbr.rel (0) target = $region41
    $region40: #{_emulator_forward_impl.1} parent=1 // pred_region
      %193 = dma.done [#allocation4], 128
    $region41: #{_emulator_forward_impl.1} parent=1 // pred_fallthru
      _
    %194 = vsyncpa [#allocation3], 1
    %195 = vsyncpa [#allocation4], 1

</llo_original>
